<compile_context>
chip_gen: v7x
topology: tpu7x:2x2x1
jax: 0.10.0
libtpu: 0.0.40
codegen_flags: <defaults>
</compile_context>

<pallas_src>
import jax
import jax.numpy as jnp
from jax.experimental import pallas as pl
from jax.experimental.pallas import tpu as pltpu


# ----------------------------------------------------------------------------
# helpers
# ----------------------------------------------------------------------------
def _vmem_budget_bytes():
    """~3/4 of physical VMEM: 96 MiB on v5e/v6e (128 MiB), 48 MiB on v7x (64 MiB)."""
    cap = 64 * 1024 * 1024
    try:
        cap = int(pltpu.get_tpu_info().vmem_capacity_bytes)
    except Exception:
        pass
    return (cap * 3) // 4


def _pick_tile(n, target):
    """Largest tile <= target that divides n and is a multiple of 128 (lane
    dense), or n itself (full-dim blocks are always legal)."""
    if n <= target:
        return n
    t = (min(target, n) // 128) * 128
    while t >= 128:
        if n % t == 0:
            return t
        t -= 128
    # TODO(synk): pad N up to a multiple of 128 for awkward sizes instead of
    # falling back to full rows (full rows can exceed the VMEM budget for huge N).
    return n


# ----------------------------------------------------------------------------
# Kernel A: negated pairwise squared distance + per-point projected features
# ----------------------------------------------------------------------------
def _dist_pre_kernel(cq_ref, ca_ref, fq_ref, wf_ref, wc_ref, ndist_ref, pre_ref):
    # cq_ref: (1, 3, TM)   ca_ref: (1, 3, N)   fq_ref: (1, C, TM)
    # wf_ref: (C, Cout)    wc_ref: (3, Cout)   (1/radius already folded into wc)
    # ndist_ref: (1, TM, N) f32                pre_ref: (1, TM, Cout)
    cqt = cq_ref[0].T                                      # (TM, 3)
    ca = ca_ref[0]                                         # (3, N)
    sq_q = jnp.sum(cqt * cqt, axis=1, keepdims=True)       # (TM, 1)
    sq_a = jnp.sum(ca * ca, axis=0, keepdims=True)         # (1, N)
    cross = jnp.dot(cqt, ca, preferred_element_type=jnp.float32)      # (TM, N)
    # negated distance: 2 q.a - |q|^2 - |a|^2   (top_k(largest) == k nearest)
    ndist_ref[0] = 2.0 * cross - sq_q - sq_a

    fqt = fq_ref[0].T                                      # (TM, C)
    pre = jnp.dot(fqt, wf_ref[...], preferred_element_type=jnp.float32)
    pre = pre + jnp.dot(cqt, wc_ref[...], preferred_element_type=jnp.float32)
    pre_ref[0] = pre.astype(pre_ref.dtype)                 # (TM, Cout)


def dist_and_pre(coords, fea, wf, wc, pre_dtype, *, vmem_budget=None):
    B, _, N = coords.shape
    C, Cout = wf.shape
    budget = _vmem_budget_bytes() if vmem_budget is None else vmem_budget
    pre_item = jnp.dtype(pre_dtype).itemsize
    # dominant per-step VMEM is the double-buffered (TM, N) f32 dist block
    tm_target = max(128, (budget // (10 * max(N, 1))) // 128 * 128)
    TM = _pick_tile(N, min(tm_target, 1024))
    cost = pl.CostEstimate(
        flops=2 * B * N * N * 3 + 2 * B * N * (C + 3) * Cout,
        transcendentals=0,
        bytes_accessed=4 * B * N * (N + 6 + C) + pre_item * B * N * Cout,
    )
    return pl.pallas_call(
        _dist_pre_kernel,
        out_shape=(jax.ShapeDtypeStruct((B, N, N), jnp.float32),
                   jax.ShapeDtypeStruct((B, N, Cout), pre_dtype)),
        grid=(B, N // TM),
        in_specs=[
            pl.BlockSpec((1, 3, TM), lambda b, m: (b, 0, m)),   # query coords tile
            pl.BlockSpec((1, 3, N), lambda b, m: (b, 0, 0)),    # all coords
            pl.BlockSpec((1, C, TM), lambda b, m: (b, 0, m)),   # query features tile
            pl.BlockSpec((C, Cout), lambda b, m: (0, 0)),
            pl.BlockSpec((3, Cout), lambda b, m: (0, 0)),
        ],
        out_specs=(
            pl.BlockSpec((1, TM, N), lambda b, m: (b, m, 0)),
            pl.BlockSpec((1, TM, Cout), lambda b, m: (b, m, 0)),
        ),
        compiler_params=pltpu.CompilerParams(
            dimension_semantics=("parallel", "parallel"),
            vmem_limit_bytes=budget),
        cost_estimate=cost,
    )(coords, coords, fea, wf, wc)


# ----------------------------------------------------------------------------
# Kernel B: group max over gathered `pre`, subtract proj, ReLU,
#           write channels-first (lane-dense over N, no wrapper transpose)
# ----------------------------------------------------------------------------
def _aggregate_kernel(g_ref, cq_ref, wc_ref, out_ref):
    # g_ref:  (1, TN, ns, Cout)   cq_ref: (1, 3, TN)   wc_ref: (3, Cout)
    # out_ref:(1, Cout, TN) f32
    g = g_ref[0].astype(jnp.float32)                       # (TN, ns, Cout)
    gmax = jnp.max(g, axis=1)                              # (TN, Cout) group max
    # proj recomputed on the fly from the tiny coords tile (never stored in HBM)
    proj_t = jnp.dot(wc_ref[...].T, cq_ref[0],
                     preferred_element_type=jnp.float32)   # (Cout, TN)
    # relu(max_s pre - proj); transpose of the small result uses the idle XLU
    out_ref[0] = jnp.maximum(gmax.T - proj_t, 0.0)


def aggregate(g_pre, coords, wc, *, vmem_budget=None):
    B, N, ns, Cout = g_pre.shape
    budget = _vmem_budget_bytes() if vmem_budget is None else vmem_budget
    item = jnp.dtype(g_pre.dtype).itemsize
    tn_target = max(128, (budget // (4 * max(ns * Cout * item, 1))) // 128 * 128)
    TN = _pick_tile(N, min(tn_target, 2048))
    cost = pl.CostEstimate(
        flops=B * N * ns * Cout + 2 * B * N * 3 * Cout + 2 * B * N * Cout,
        transcendentals=0,
        bytes_accessed=item * B * N * ns * Cout + 4 * B * N * (3 + Cout),
    )
    return pl.pallas_call(
        _aggregate_kernel,
        out_shape=jax.ShapeDtypeStruct((B, Cout, N), jnp.float32),
        grid=(B, N // TN),
        in_specs=[
            pl.BlockSpec((1, TN, ns, Cout), lambda b, n: (b, n, 0, 0)),
            pl.BlockSpec((1, 3, TN), lambda b, n: (b, 0, n)),
            pl.BlockSpec((3, Cout), lambda b, n: (0, 0)),
        ],
        out_specs=pl.BlockSpec((1, Cout, TN), lambda b, n: (b, 0, n)),
        compiler_params=pltpu.CompilerParams(
            dimension_semantics=("parallel", "parallel"),
            vmem_limit_bytes=budget),
        cost_estimate=cost,
    )(g_pre, coords, wc)


# ----------------------------------------------------------------------------
# Wrapper reproducing LocalAggregation.forward
# ----------------------------------------------------------------------------
def local_aggregation(points_coor, points_fea, weight, radius, nsample,
                      *, pre_dtype=jnp.bfloat16):
    """points_coor: (B, 3, N), points_fea: (B, C, N), weight: (Cout, C+3).
    Returns new_fea: (B, Cout, N)."""
    B, _, N = points_coor.shape
    C = points_fea.shape[1]
    coords = points_coor[:, :3, :].astype(jnp.float32)     # (B, 3, N) channels-first
    fea = points_fea.astype(jnp.float32)                   # (B, C, N)

    w = jnp.asarray(weight, jnp.float32)                   # (Cout, C+3)
    wf = w[:, :C].T                                        # (C, Cout)
    wc = w[:, C:C + 3].T / radius                          # (3, Cout), 1/r folded in

    # Kernel A: -dist (no wrapper negation pass) + per-point projected features.
    neg_dist, pre = dist_and_pre(coords, fea, wf, wc, pre_dtype)

    # G: hybrid kNN / ball query (selection in XLA).
    # TODO(synk): stream the k-selection inside kernel A (running k-smallest per
    # query row in VMEM scratch) so the (B, N, N) matrix never hits HBM.
    neg_vals, idx = jax.lax.top_k(neg_dist, nsample)       # k nearest
    mask = neg_vals < -(radius * radius)                   # dist > r^2
    group_idx = jnp.where(mask, idx[..., :1], idx)         # (B, N, ns)

    # TODO(synk): in-kernel scalar-prefetch DMA gather of `pre` would remove this
    # HBM round trip; its payload is already minimized to Cout bf16 per neighbor.
    g_pre = jax.vmap(lambda p, i: p[i])(pre, group_idx)    # (B, N, ns, Cout)

    # P: group max, subtract per-point bias, ReLU -> (B, Cout, N).
    return aggregate(g_pre, coords, wc)


# ----------------------------------------------------------------------------
# Pure-JAX reference (mirrors the PyTorch forward) for the correctness check
# ----------------------------------------------------------------------------
def local_aggregation_ref(points_coor, points_fea, weight, radius, nsample):
    coords = jnp.transpose(points_coor, (0, 2, 1))
    fea = jnp.transpose(points_fea, (0, 2, 1))
    sq = jnp.sum(coords ** 2, axis=-1)
    dist = (-2.0 * jnp.einsum('bmc,bnc->bmn', coords, coords)
            + sq[:, :, None] + sq[:, None, :])
    neg_vals, idx = jax.lax.top_k(-dist, nsample)
    mask = (-neg_vals) > radius ** 2
    group_idx = jnp.where(mask, idx[..., :1], idx)
    gather = jax.vmap(lambda p, i: p[i])
    g_coor = (gather(coords, group_idx) - coords[:, :, None, :]) / radius
    g_fea = gather(fea, group_idx)
    g = jnp.concatenate([g_fea, g_coor], axis=-1)          # (B, N, ns, C+3)
    y = jnp.maximum(jnp.einsum('bnsc,oc->bnso', g, weight), 0.0)
    return jnp.transpose(jnp.max(y, axis=2), (0, 2, 1))    # (B, Cout, N)


if __name__ == "__main__":
    key = jax.random.PRNGKey(0)
    k1, k2, k3 = jax.random.split(key, 3)

    B, C, N = 2, 4, 16
    coor_dim = 3
    radius, nsample = 0.5, 8

    points_coor = jax.random.uniform(k1, (B, coor_dim, N), jnp.float32)
    points_fea = jax.random.normal(k2, (B, C, N), jnp.float32)

    # Conv2d(C+3 -> C, kernel_size=1, bias=False) weight, deterministic init
    fan_in = C + coor_dim
    bound = 1.0 / (fan_in ** 0.5)
    weight = jax.random.uniform(k3, (C, fan_in), jnp.float32, -bound, bound)

    ref = local_aggregation_ref(points_coor, points_fea, weight, radius, nsample)

    # f32 feature path: tight check against the reference.
    out_f32 = local_aggregation(points_coor, points_fea, weight, radius, nsample,
                                pre_dtype=jnp.float32)
    out_f32 = jax.block_until_ready(out_f32)
    assert out_f32.shape == (B, C, N), out_f32.shape
    assert bool(jnp.allclose(out_f32, ref, atol=1e-3, rtol=1e-3)), "f32 mismatch"

    # Default bf16 gathered-feature path (halves the dominant HBM stream);
    # tolerance sized to one bf16 rounding of the pre-activation values.
    out_bf16 = local_aggregation(points_coor, points_fea, weight, radius, nsample)
    out_bf16 = jax.block_until_ready(out_bf16)
    assert out_bf16.shape == (B, C, N), out_bf16.shape
    assert bool(jnp.allclose(out_bf16, ref, atol=2e-2, rtol=2e-2)), "bf16 mismatch"

    print("KERNEL_OK")
</pallas_src>

<mosaic_0001>
module attributes {stable_mosaic.version = 11 : i64} {
  func.func @_dist_pre_kernel(%arg0: i32, %arg1: i32, %arg2: memref<1x3x16xf32, #tpu.memory_space<vmem>>, %arg3: memref<1x3x16xf32, #tpu.memory_space<vmem>>, %arg4: memref<1x4x16xf32, #tpu.memory_space<vmem>>, %arg5: memref<4x4xf32, #tpu.memory_space<vmem>>, %arg6: memref<3x4xf32, #tpu.memory_space<vmem>>, %arg7: memref<1x16x16xf32, #tpu.memory_space<vmem>>, %arg8: memref<1x16x4xf32, #tpu.memory_space<vmem>>) attributes {dimension_semantics = [#tpu.dimension_semantics<parallel>, #tpu.dimension_semantics<parallel>], iteration_bounds = array<i64: 2, 1>, scalar_prefetch = 0 : i64, scratch_operands = 0 : i64, tpu.core_type = #tpu.core_type<tc>, window_params = [{transform_indices = @transform_0, window_bounds = array<i64: 1, 3, 16>}, {transform_indices = @transform_1, window_bounds = array<i64: 1, 3, 16>}, {transform_indices = @transform_2, window_bounds = array<i64: 1, 4, 16>}, {pipeline_mode = #tpu.pipeline_mode<synchronous>, transform_indices = @transform_3, window_bounds = array<i64: 4, 4>}, {pipeline_mode = #tpu.pipeline_mode<synchronous>, transform_indices = @transform_4, window_bounds = array<i64: 3, 4>}, {transform_indices = @transform_5, window_bounds = array<i64: 1, 16, 16>}, {transform_indices = @transform_6, window_bounds = array<i64: 1, 16, 4>}]} {
    %c0 = arith.constant 0 : index
    %c0_0 = arith.constant 0 : index
    %c0_1 = arith.constant 0 : index
    %0 = vector.load %arg2[%c0, %c0_0, %c0_1] : memref<1x3x16xf32, #tpu.memory_space<vmem>>, vector<1x3x16xf32>
    %1 = vector.shape_cast %0 : vector<1x3x16xf32> to vector<3x16xf32>
    %2 = tpu.transpose %1, [1, 0] : vector<3x16xf32> -> vector<16x3xf32>
    %c0_2 = arith.constant 0 : index
    %c0_3 = arith.constant 0 : index
    %c0_4 = arith.constant 0 : index
    %3 = vector.load %arg3[%c0_2, %c0_3, %c0_4] : memref<1x3x16xf32, #tpu.memory_space<vmem>>, vector<1x3x16xf32>
    %4 = vector.shape_cast %3 : vector<1x3x16xf32> to vector<3x16xf32>
    %5 = arith.mulf %2, %2 : vector<16x3xf32>
    %cst = arith.constant dense<0.000000e+00> : vector<16xf32>
    %6 = vector.multi_reduction <add>, %5, %cst [1] : vector<16x3xf32> to vector<16xf32>
    %7 = vector.shape_cast %6 : vector<16xf32> to vector<16x1xf32>
    %8 = arith.mulf %4, %4 : vector<3x16xf32>
    %cst_5 = arith.constant dense<0.000000e+00> : vector<16xf32>
    %9 = vector.multi_reduction <add>, %8, %cst_5 [0] : vector<3x16xf32> to vector<16xf32>
    %10 = vector.shape_cast %9 : vector<16xf32> to vector<1x16xf32>
    %cst_6 = arith.constant dense<0.000000e+00> : vector<16x16xf32>
    %11 = tpu.matmul %2, %4, %cst_6 {dimension_numbers = #tpu.dot_dimension_numbers<[1], [0], [0], [1], [0, 0, 1, 1], [], []>} : vector<16x3xf32>, vector<3x16xf32>, vector<16x16xf32> -> vector<16x16xf32>
    %cst_7 = arith.constant 2.000000e+00 : f32
    %12 = vector.broadcast %cst_7 : f32 to vector<16x16xf32>
    %13 = arith.mulf %12, %11 : vector<16x16xf32>
    %14 = vector.broadcast %7 : vector<16x1xf32> to vector<16x16xf32>
    %15 = arith.subf %13, %14 : vector<16x16xf32>
    %16 = vector.broadcast %10 : vector<1x16xf32> to vector<16x16xf32>
    %17 = arith.subf %15, %16 : vector<16x16xf32>
    %c0_8 = arith.constant 0 : index
    %c0_9 = arith.constant 0 : index
    %c0_10 = arith.constant 0 : index
    %18 = vector.load %arg7[%c0_8, %c0_9, %c0_10] : memref<1x16x16xf32, #tpu.memory_space<vmem>>, vector<1x16x16xf32>
    %19 = vector.shape_cast %18 : vector<1x16x16xf32> to vector<16x16xf32>
    %20 = vector.shape_cast %17 : vector<16x16xf32> to vector<1x16x16xf32>
    tpu.vector_store %arg7[%c0_8, %c0_9, %c0_10], %20 {strides = array<i32>} : memref<1x16x16xf32, #tpu.memory_space<vmem>>, vector<1x16x16xf32>,
    %c0_11 = arith.constant 0 : index
    %c0_12 = arith.constant 0 : index
    %c0_13 = arith.constant 0 : index
    %21 = vector.load %arg4[%c0_11, %c0_12, %c0_13] : memref<1x4x16xf32, #tpu.memory_space<vmem>>, vector<1x4x16xf32>
    %22 = vector.shape_cast %21 : vector<1x4x16xf32> to vector<4x16xf32>
    %23 = tpu.transpose %22, [1, 0] : vector<4x16xf32> -> vector<16x4xf32>
    %c0_14 = arith.constant 0 : index
    %c0_15 = arith.constant 0 : index
    %24 = vector.load %arg5[%c0_14, %c0_15] : memref<4x4xf32, #tpu.memory_space<vmem>>, vector<4x4xf32>
    %cst_16 = arith.constant dense<0.000000e+00> : vector<16x4xf32>
    %25 = tpu.matmul %23, %24, %cst_16 {dimension_numbers = #tpu.dot_dimension_numbers<[1], [0], [0], [1], [0, 0, 1, 1], [], []>} : vector<16x4xf32>, vector<4x4xf32>, vector<16x4xf32> -> vector<16x4xf32>
    %c0_17 = arith.constant 0 : index
    %c0_18 = arith.constant 0 : index
    %26 = vector.load %arg6[%c0_17, %c0_18] : memref<3x4xf32, #tpu.memory_space<vmem>>, vector<3x4xf32>
    %cst_19 = arith.constant dense<0.000000e+00> : vector<16x4xf32>
    %27 = tpu.matmul %2, %26, %cst_19 {dimension_numbers = #tpu.dot_dimension_numbers<[1], [0], [0], [1], [0, 0, 1, 1], [], []>} : vector<16x3xf32>, vector<3x4xf32>, vector<16x4xf32> -> vector<16x4xf32>
    %28 = arith.addf %25, %27 : vector<16x4xf32>
    %c0_20 = arith.constant 0 : index
    %c0_21 = arith.constant 0 : index
    %c0_22 = arith.constant 0 : index
    %29 = vector.load %arg8[%c0_20, %c0_21, %c0_22] : memref<1x16x4xf32, #tpu.memory_space<vmem>>, vector<1x16x4xf32>
    %30 = vector.shape_cast %29 : vector<1x16x4xf32> to vector<16x4xf32>
    %31 = vector.shape_cast %28 : vector<16x4xf32> to vector<1x16x4xf32>
    tpu.vector_store %arg8[%c0_20, %c0_21, %c0_22], %31 {strides = array<i32>} : memref<1x16x4xf32, #tpu.memory_space<vmem>>, vector<1x16x4xf32>,
    return
  }
  func.func @transform_0(%arg0: i32, %arg1: i32) -> (i32, i32, i32) {
    %c0_i32 = arith.constant 0 : i32
    %c0_i32_0 = arith.constant 0 : i32
    return %arg0, %c0_i32, %arg1 : i32, i32, i32
  }
  func.func @transform_1(%arg0: i32, %arg1: i32) -> (i32, i32, i32) {
    %c0_i32 = arith.constant 0 : i32
    %c0_i32_0 = arith.constant 0 : i32
    %c0_i32_1 = arith.constant 0 : i32
    return %arg0, %c0_i32, %c0_i32_0 : i32, i32, i32
  }
  func.func @transform_2(%arg0: i32, %arg1: i32) -> (i32, i32, i32) {
    %c0_i32 = arith.constant 0 : i32
    %c0_i32_0 = arith.constant 0 : i32
    return %arg0, %c0_i32, %arg1 : i32, i32, i32
  }
  func.func @transform_3(%arg0: i32, %arg1: i32) -> (i32, i32) {
    %c0_i32 = arith.constant 0 : i32
    %c0_i32_0 = arith.constant 0 : i32
    %c0_i32_1 = arith.constant 0 : i32
    return %c0_i32, %c0_i32_0 : i32, i32
  }
  func.func @transform_4(%arg0: i32, %arg1: i32) -> (i32, i32) {
    %c0_i32 = arith.constant 0 : i32
    %c0_i32_0 = arith.constant 0 : i32
    %c0_i32_1 = arith.constant 0 : i32
    return %c0_i32, %c0_i32_0 : i32, i32
  }
  func.func @transform_5(%arg0: i32, %arg1: i32) -> (i32, i32, i32) {
    %c0_i32 = arith.constant 0 : i32
    %c0_i32_0 = arith.constant 0 : i32
    return %arg0, %arg1, %c0_i32 : i32, i32, i32
  }
  func.func @transform_6(%arg0: i32, %arg1: i32) -> (i32, i32, i32) {
    %c0_i32 = arith.constant 0 : i32
    %c0_i32_0 = arith.constant 0 : i32
    return %arg0, %arg1, %c0_i32 : i32, i32, i32
  }
}

</mosaic_0001>

<llo_original>
// kernel: tpu_custom_call.1
$region0: #{tpu_custom_call.1}
  #allocation0 [shape = 'u32[]', space=smem, size = 0x4, offset = 0x4, fixed_abs, tag = 'smem constant byte address 0x4 - core index']
  #allocation1 [shape = 'u32[144,128]{1,0:T(1,128)}', space=vmem, size = 0x12000, scoped, tag = 'internal scratch']
  %s0 = inlined_call_operand.vmem [shape: f32[2,3,16], index: 0, kind: input, shape index: {}]
  %s1 = inlined_call_operand.vmem [shape: f32[2,3,16], index: 1, kind: input, shape index: {}]
  %s2 = inlined_call_operand.vmem [shape: f32[2,4,16], index: 2, kind: input, shape index: {}]
  %s3 = inlined_call_operand.vmem [shape: f32[4,4], index: 3, kind: input, shape index: {}]
  %s4 = inlined_call_operand.vmem [shape: f32[3,4], index: 4, kind: input, shape index: {}]
  %s5 = inlined_call_operand.hbm [shape: f32[2,16,16], index: 5, kind: output, shape index: {0}]
  %s6 = inlined_call_operand.vmem [shape: f32[2,16,4], index: 6, kind: output, shape index: {1}]
  %7 = xla_tuple %s5, %s6
  %s8 = sld [smem:[#allocation0]]
  $region61: #{tpu_custom_call.1} parent=0
    _
  %s10 = ssub.s32 1, %s8
  %s11 = scalar_select 0, %s10, %s8
  $region1: #{tpu_custom_call.1} parent=0
    #allocation2 [shape = 'u8[16384]{0}', space=vmem, size = 0x4000, scoped, tag = 'output window, operand 0']
    #allocation3 [shape = 's32[2]{0}', space=sflag, size = 0x8, scoped, tag = 'scoped memory for tpu_custom_call.1']
    %12 = vsyncpa [#allocation3], 0
    %s13 = scalar_lea.sflag [#allocation3], 1
    %14 = vsyncpa %s13, 0
    loop: start=0, step=1, limit=4
    $region2: #{tpu_custom_call.1} parent=1 // loop_pre_header
      _
    $region3: #{tpu_custom_call.1} parent=1 // loop_header
      %s16 = sphi 0, %s20
      %p17 = scmp.ge.s32.totalorder %s16, 4
      %s23 = sphi 0, %s35
      %s24 = sphi 0, %s31
      %s25 = sphi 0, %s23
      %s26 = sphi 0, %s24
      %s27 = sphi 0, %s25
      %s28 = sphi 0, %s26
      %s40 = sphi 0, %s42
      %s43 = sphi 0, %s40
      %s44 = sphi 0, %s43
      %s60 = sphi 0, %s44
      %s66 = sphi 0, %s68
      %s69 = sphi 0, %s66
      %s70 = sphi 0, %s69
      %s86 = sphi 0, %s70
      %s94 = sphi 0, %s96
      %s97 = sphi 0, %s94
      %s98 = sphi 0, %s97
      %s114 = sphi 0, %s98
      %s118 = sphi 0, %s118
      %s120 = sphi 0, %s118
      %s121 = sphi 0, %s120
      %s135 = sphi 0, %s121
      %s139 = sphi 0, %s139
      %s141 = sphi 0, %s139
      %s142 = sphi 0, %s141
      %s156 = sphi 0, %s142
      %s164 = sphi 0, %s166
      %s167 = sphi 0, %s164
      %s168 = sphi 0, %s167
      %s184 = sphi 0, %s168
      %s192 = sphi 0, %s194
      %s195 = sphi 0, %s192
      %s196 = sphi 0, %s195
      %s212 = sphi 0, %s196
    $region4: #{tpu_custom_call.1} parent=1 // loop_header_branch
      %19 = sbr.rel (%p17) target = $region8
    $region5: #{tpu_custom_call.1} parent=1 // loop_body
      %s21 = ssub.s32 %s16, 1
      %s22 = ssub.s32 %s16, 2
      %s29 = sadd.s32 1, %s24
      %p30 = scmp.ge.s32.totalorder %s29, 1
      %s31 = scalar_select %p30, 0, %s29
      %s32 = sadd.s32 1, %s23
      %s33 = scalar_select %p30, %s32, %s23
      %p34 = scmp.ge.s32.totalorder %s33, 2
      %s35 = scalar_select %p34, 0, %s33
      %s36 = ssub.s32 %s23, %s35
      %s37 = ssub.s32 %s24, %s31
      %s38 = sor.u32 %s36, %s37
      %p39 = scmp.eq.s32.totalorder %s38, 0
      %s41 = sadd.s32 %s40, 1
      %s42 = scalar_select %p39, %s40, %s41
      %p45 = pneg %p39
      %p46 = scmp.eq.s32.totalorder %s16, 1
      %p47 = por %p45, %p46
      %p48 = scmp.ne.s32.totalorder %s40, %s43
      %p49 = scmp.eq.s32.totalorder %s16, 0
      %p50 = por %p48, %p49
      %p51 = scmp.ne.s32.totalorder %s40, %s43
      %p52 = scmp.eq.s32.totalorder %s21, 1
      %p53 = por %p51, %p52
      %p54 = scmp.ne.s32.totalorder %s43, %s44
      %p55 = scmp.eq.s32.totalorder %s21, 0
      %p56 = por %p54, %p55
      %p57 = scmp.ne.s32.totalorder %s43, %s44
      %p58 = scmp.eq.s32.totalorder %s22, 1
      %p59 = por %p57, %p58
      %p61 = scmp.ne.s32.totalorder %s44, %s60
      %p62 = scmp.eq.s32.totalorder %s22, 0
      %p63 = por %p61, %p62
      %s64 = ssub.s32 %s23, %s35
      %p65 = scmp.eq.s32.totalorder %s64, 0
      %s67 = sadd.s32 %s66, 1
      %s68 = scalar_select %p65, %s66, %s67
      %p71 = pneg %p65
      %p72 = scmp.eq.s32.totalorder %s16, 1
      %p73 = por %p71, %p72
      %p74 = scmp.ne.s32.totalorder %s66, %s69
      %p75 = scmp.eq.s32.totalorder %s16, 0
      %p76 = por %p74, %p75
      %p77 = scmp.ne.s32.totalorder %s66, %s69
      %p78 = scmp.eq.s32.totalorder %s21, 1
      %p79 = por %p77, %p78
      %p80 = scmp.ne.s32.totalorder %s69, %s70
      %p81 = scmp.eq.s32.totalorder %s21, 0
      %p82 = por %p80, %p81
      %p83 = scmp.ne.s32.totalorder %s69, %s70
      %p84 = scmp.eq.s32.totalorder %s22, 1
      %p85 = por %p83, %p84
      %p87 = scmp.ne.s32.totalorder %s70, %s86
      %p88 = scmp.eq.s32.totalorder %s22, 0
      %p89 = por %p87, %p88
      %s90 = ssub.s32 %s23, %s35
      %s91 = ssub.s32 %s24, %s31
      %s92 = sor.u32 %s90, %s91
      %p93 = scmp.eq.s32.totalorder %s92, 0
      %s95 = sadd.s32 %s94, 1
      %s96 = scalar_select %p93, %s94, %s95
      %p99 = pneg %p93
      %p100 = scmp.eq.s32.totalorder %s16, 1
      %p101 = por %p99, %p100
      %p102 = scmp.ne.s32.totalorder %s94, %s97
      %p103 = scmp.eq.s32.totalorder %s16, 0
      %p104 = por %p102, %p103
      %p105 = scmp.ne.s32.totalorder %s94, %s97
      %p106 = scmp.eq.s32.totalorder %s21, 1
      %p107 = por %p105, %p106
      %p108 = scmp.ne.s32.totalorder %s97, %s98
      %p109 = scmp.eq.s32.totalorder %s21, 0
      %p110 = por %p108, %p109
      %p111 = scmp.ne.s32.totalorder %s97, %s98
      %p112 = scmp.eq.s32.totalorder %s22, 1
      %p113 = por %p111, %p112
      %p115 = scmp.ne.s32.totalorder %s98, %s114
      %p116 = scmp.eq.s32.totalorder %s22, 0
      %p117 = por %p115, %p116
      %s119 = sadd.s32 %s118, 1
      %p122 = scmp.eq.s32.totalorder %s16, 1
      %p123 = scmp.ne.s32.totalorder %s118, %s120
      %p124 = scmp.eq.s32.totalorder %s16, 0
      %p125 = por %p123, %p124
      %p126 = scmp.ne.s32.totalorder %s118, %s120
      %p127 = scmp.eq.s32.totalorder %s21, 1
      %p128 = por %p126, %p127
      %p129 = scmp.ne.s32.totalorder %s120, %s121
      %p130 = scmp.eq.s32.totalorder %s21, 0
      %p131 = por %p129, %p130
      %p132 = scmp.ne.s32.totalorder %s120, %s121
      %p133 = scmp.eq.s32.totalorder %s22, 1
      %p134 = por %p132, %p133
      %p136 = scmp.ne.s32.totalorder %s121, %s135
      %p137 = scmp.eq.s32.totalorder %s22, 0
      %p138 = por %p136, %p137
      %s140 = sadd.s32 %s139, 1
      %p143 = scmp.eq.s32.totalorder %s16, 1
      %p144 = scmp.ne.s32.totalorder %s139, %s141
      %p145 = scmp.eq.s32.totalorder %s16, 0
      %p146 = por %p144, %p145
      %p147 = scmp.ne.s32.totalorder %s139, %s141
      %p148 = scmp.eq.s32.totalorder %s21, 1
      %p149 = por %p147, %p148
      %p150 = scmp.ne.s32.totalorder %s141, %s142
      %p151 = scmp.eq.s32.totalorder %s21, 0
      %p152 = por %p150, %p151
      %p153 = scmp.ne.s32.totalorder %s141, %s142
      %p154 = scmp.eq.s32.totalorder %s22, 1
      %p155 = por %p153, %p154
      %p157 = scmp.ne.s32.totalorder %s142, %s156
      %p158 = scmp.eq.s32.totalorder %s22, 0
      %p159 = por %p157, %p158
      %s160 = ssub.s32 %s23, %s35
      %s161 = ssub.s32 %s24, %s31
      %s162 = sor.u32 %s160, %s161
      %p163 = scmp.eq.s32.totalorder %s162, 0
      %s165 = sadd.s32 %s164, 1
      %s166 = scalar_select %p163, %s164, %s165
      %p169 = pneg %p163
      %p170 = scmp.eq.s32.totalorder %s16, 1
      %p171 = por %p169, %p170
      %p172 = scmp.ne.s32.totalorder %s164, %s167
      %p173 = scmp.eq.s32.totalorder %s16, 0
      %p174 = por %p172, %p173
      %p175 = scmp.ne.s32.totalorder %s164, %s167
      %p176 = scmp.eq.s32.totalorder %s21, 1
      %p177 = por %p175, %p176
      %p178 = scmp.ne.s32.totalorder %s167, %s168
      %p179 = scmp.eq.s32.totalorder %s21, 0
      %p180 = por %p178, %p179
      %p181 = scmp.ne.s32.totalorder %s167, %s168
      %p182 = scmp.eq.s32.totalorder %s22, 1
      %p183 = por %p181, %p182
      %p185 = scmp.ne.s32.totalorder %s168, %s184
      %p186 = scmp.eq.s32.totalorder %s22, 0
      %p187 = por %p185, %p186
      %s188 = ssub.s32 %s23, %s35
      %s189 = ssub.s32 %s24, %s31
      %s190 = sor.u32 %s188, %s189
      %p191 = scmp.eq.s32.totalorder %s190, 0
      %s193 = sadd.s32 %s192, 1
      %s194 = scalar_select %p191, %s192, %s193
      %p197 = pneg %p191
      %p198 = scmp.eq.s32.totalorder %s16, 1
      %p199 = por %p197, %p198
      %p200 = scmp.ne.s32.totalorder %s192, %s195
      %p201 = scmp.eq.s32.totalorder %s16, 0
      %p202 = por %p200, %p201
      %p203 = scmp.ne.s32.totalorder %s192, %s195
      %p204 = scmp.eq.s32.totalorder %s21, 1
      %p205 = por %p203, %p204
      %p206 = scmp.ne.s32.totalorder %s195, %s196
      %p207 = scmp.eq.s32.totalorder %s21, 0
      %p208 = por %p206, %p207
      %p209 = scmp.ne.s32.totalorder %s195, %s196
      %p210 = scmp.eq.s32.totalorder %s22, 1
      %p211 = por %p209, %p210
      %p213 = scmp.ne.s32.totalorder %s196, %s212
      %p214 = scmp.eq.s32.totalorder %s22, 0
      %p215 = por %p213, %p214
      %p216 = scmp.le.s32.totalorder 1, %s16
      %p217 = scmp.lt.s32.totalorder %s16, 3
      %p218 = pnand %p216, %p217
      %p219 = pneg %p218
      // Predicated region
      $region9: #{tpu_custom_call.1} parent=5 // pred_check
        _
      $region10: #{tpu_custom_call.1} parent=5 // pred_check_branch
        %221 = sbr.rel (%p218) target = $region12
      $region11: #{tpu_custom_call.1} parent=5 // pred_region
        %s222 = ssub.s32 %s16, 1
        // Predicated region
        $region13: #{tpu_custom_call.1} parent=11 // pred_check
          %p223 = pneg %p131
        $region14: #{tpu_custom_call.1} parent=11 // pred_check_branch
          %225 = sbr.rel (%p223) target = $region16
        $region15: #{tpu_custom_call.1} parent=11 // pred_region
          _
        $region16: #{tpu_custom_call.1} parent=11 // pred_fallthru
          _
        // Predicated region
        $region17: #{tpu_custom_call.1} parent=11 // pred_check
          %p226 = pneg %p152
        $region18: #{tpu_custom_call.1} parent=11 // pred_check_branch
          %228 = sbr.rel (%p226) target = $region20
        $region19: #{tpu_custom_call.1} parent=11 // pred_region
          _
        $region20: #{tpu_custom_call.1} parent=11 // pred_fallthru
          _
      $region12: #{tpu_custom_call.1} parent=5 // pred_fallthru
        _
      %p229 = scmp.lt.s32.totalorder %s16, 2
      // Predicated region
      $region21: #{tpu_custom_call.1} parent=5 // pred_check
        %p230 = pneg %p229
      $region22: #{tpu_custom_call.1} parent=5 // pred_check_branch
        %232 = sbr.rel (%p230) target = $region24
      $region23: #{tpu_custom_call.1} parent=5 // pred_region
        // Predicated region
        $region25: #{tpu_custom_call.1} parent=23 // pred_check
          %p233 = pneg %p50
        $region26: #{tpu_custom_call.1} parent=23 // pred_check_branch
          %235 = sbr.rel (%p233) target = $region28
        $region27: #{tpu_custom_call.1} parent=23 // pred_region
          %p236 = scmp.lt.s32.totalorder %s23, 1
          %s237 = scalar_select %p236, %s23, 1
          %p238 = scmp.lt.s32.totalorder %s24, 0
          %s239 = scalar_select %p238, %s24, 0
          %s240 = sadd.s32 %s239, %s237
          %s241 = smul.addr %s240, 4
          %s242 = scalar_lea.vmem %s0, %s241
        $region28: #{tpu_custom_call.1} parent=23 // pred_fallthru
          _
        // Predicated region
        $region29: #{tpu_custom_call.1} parent=23 // pred_check
          %p243 = pneg %p76
        $region30: #{tpu_custom_call.1} parent=23 // pred_check_branch
          %245 = sbr.rel (%p243) target = $region32
        $region31: #{tpu_custom_call.1} parent=23 // pred_region
          %p246 = scmp.lt.s32.totalorder %s23, 1
          %s247 = scalar_select %p246, %s23, 1
          %s248 = smul.addr %s247, 4
          %s249 = scalar_lea.vmem %s1, %s248
        $region32: #{tpu_custom_call.1} parent=23 // pred_fallthru
          _
        // Predicated region
        $region33: #{tpu_custom_call.1} parent=23 // pred_check
          %p250 = pneg %p104
        $region34: #{tpu_custom_call.1} parent=23 // pred_check_branch
          %252 = sbr.rel (%p250) target = $region36
        $region35: #{tpu_custom_call.1} parent=23 // pred_region
          %p253 = scmp.lt.s32.totalorder %s23, 1
          %s254 = scalar_select %p253, %s23, 1
          %p255 = scmp.lt.s32.totalorder %s24, 0
          %s256 = scalar_select %p255, %s24, 0
          %s257 = sadd.s32 %s256, %s254
          %s258 = smul.addr %s257, 4
          %s259 = scalar_lea.vmem %s2, %s258
        $region36: #{tpu_custom_call.1} parent=23 // pred_fallthru
          _
      $region24: #{tpu_custom_call.1} parent=5 // pred_fallthru
        _
      %p260 = scmp.le.s32.totalorder 1, %s16
      %p261 = scmp.lt.s32.totalorder %s16, 3
      %p262 = pnand %p260, %p261
      %p263 = pneg %p262
      // Predicated region
      $region37: #{tpu_custom_call.1} parent=5 // pred_check
        _
      $region38: #{tpu_custom_call.1} parent=5 // pred_check_branch
        %265 = sbr.rel (%p262) target = $region40
      $region39: #{tpu_custom_call.1} parent=5 // pred_region
        %s266 = ssub.s32 %s16, 1
        %p267 = scmp.lt.s32.totalorder %s25, 1
        %s268 = scalar_select %p267, %s25, 1
        %p269 = scmp.lt.s32.totalorder %s26, 0
        %s270 = scalar_select %p269, %s26, 0
        %s271 = sadd.s32 %s270, %s268
        %s272 = smul.addr %s271, 4
        %s273 = scalar_lea.vmem %s0, %s272
        %p274 = pneg %p56
        %p275 = pneg %p53
        %p276 = scmp.lt.s32.totalorder %s25, 1
        %s277 = scalar_select %p276, %s25, 1
        %s278 = smul.addr %s277, 4
        %s279 = scalar_lea.vmem %s1, %s278
        %p280 = pneg %p82
        %p281 = pneg %p79
        %p282 = scmp.lt.s32.totalorder %s25, 1
        %s283 = scalar_select %p282, %s25, 1
        %p284 = scmp.lt.s32.totalorder %s26, 0
        %s285 = scalar_select %p284, %s26, 0
        %s286 = sadd.s32 %s285, %s283
        %s287 = smul.addr %s286, 4
        %s288 = scalar_lea.vmem %s2, %s287
        %p289 = pneg %p110
        %p290 = pneg %p107
        %p291 = pneg %p131
        %p292 = pneg %p128
        %p293 = pneg %p152
        %p294 = pneg %p149
        %p295 = pneg %p180
        %p296 = pneg %p177
        %s297 = sand.u32 %s167, 1
        %s298 = scalar_lea.sflag [#allocation3], %s297
        %s299 = sand.u32 %s167, 1
        %s300 = smul.addr %s299, 16
        %s301 = scalar_lea.vmem [#allocation2], %s300
        %p302 = pneg %p208
        %p303 = pneg %p205
        %s304 = smul.u32 2, %s26
        %p305 = scmp.lt.s32.totalorder %s25, 1
        %s306 = scalar_select %p305, %s25, 1
        %p307 = scmp.lt.s32.totalorder %s304, 1
        %s308 = scalar_select %p307, %s304, 1
        %s309 = smul.addr %s306, 2
        %s310 = sadd.s32 %s308, %s309
        %s311 = smul.addr %s310, 8
        %s312 = scalar_lea.vmem %s6, %s311
        %p313 = scmp.lt.s32.totalorder %s25, 1
        %s314 = scalar_select %p313, %s25, 1
        %p315 = scmp.lt.s32.totalorder %s26, 0
        %s316 = scalar_select %p315, %s26, 0
        %s317 = sadd.s32 %s316, %s314
        %s318 = smul.addr %s317, 4
        %s319 = scalar_lea.vmem %s0, %s318
        %p320 = scmp.lt.s32.totalorder %s25, 1
        %s321 = scalar_select %p320, %s25, 1
        %s322 = smul.addr %s321, 4
        %s323 = scalar_lea.vmem %s1, %s322
        %p324 = scmp.lt.s32.totalorder %s25, 1
        %s325 = scalar_select %p324, %s25, 1
        %p326 = scmp.lt.s32.totalorder %s26, 0
        %s327 = scalar_select %p326, %s26, 0
        %s328 = sadd.s32 %s327, %s325
        %s329 = smul.addr %s328, 4
        %s330 = scalar_lea.vmem %s2, %s329
        %s331 = smul.u32 2, %s26
        %s332 = smul.u32 2, %s26
        %p333 = scmp.lt.s32.totalorder %s25, 1
        %s334 = scalar_select %p333, %s25, 1
        %p335 = scmp.lt.s32.totalorder %s332, 1
        %s336 = scalar_select %p335, %s332, 1
        %s337 = smul.addr %s334, 2
        %s338 = sadd.s32 %s336, %s337
        %s339 = smul.addr %s338, 8
        %s340 = scalar_lea.vmem %s6, %s339
        %s341 = smul.u32 2, %s26
        %v342 = vld [vmem:[%s319] sm:$0x7]
        %343 = vxpose.xlu0.b32.start [1/16] %v342, 128
        %344 = vxpose.xlu0.b32.cont [2/16] 0.0, 128
        %345 = vxpose.xlu0.b32.cont [3/16] 0.0, 128
        %346 = vxpose.xlu0.b32.cont [4/16] 0.0, 128
        %347 = vxpose.xlu0.b32.cont [5/16] 0.0, 128
        %348 = vxpose.xlu0.b32.cont [6/16] 0.0, 128
        %349 = vxpose.xlu0.b32.cont [7/16] 0.0, 128
        %350 = vxpose.xlu0.b32.cont [8/16] 0.0, 128
        %351 = vxpose.xlu0.b32.cont [9/16] 0.0, 128
        %352 = vxpose.xlu0.b32.cont [10/16] 0.0, 128
        %353 = vxpose.xlu0.b32.cont [11/16] 0.0, 128
        %354 = vxpose.xlu0.b32.cont [12/16] 0.0, 128
        %355 = vxpose.xlu0.b32.cont [13/16] 0.0, 128
        %356 = vxpose.xlu0.b32.cont [14/16] 0.0, 128
        %357 = vxpose.xlu0.b32.cont [15/16] 0.0, 128
        %358 = vxpose.xlu0.b32.end [16/16] 0.0, 128
        %v359 = vpop.trf.xlu0
        %v360 = vpop.trf.xlu0
        %v361 = vpop.trf.xlu0
        %v362 = vpop.trf.xlu0
        %v363 = vpop.trf.xlu0
        %v364 = vpop.trf.xlu0
        %v365 = vpop.trf.xlu0
        %v366 = vpop.trf.xlu0
        %v367 = vpop.trf.xlu0
        %v368 = vpop.trf.xlu0
        %v369 = vpop.trf.xlu0
        %v370 = vpop.trf.xlu0
        %v371 = vpop.trf.xlu0
        %v372 = vpop.trf.xlu0
        %v373 = vpop.trf.xlu0
        %v374 = vpop.trf.xlu0
        %v375 = vld [vmem:[%s323] sm:$0x7]
        %v376 = vmul.f32 %v359, %v359
        %v377 = vmul.f32 %v360, %v360
        %vm378 = vcmask 23552
        %v379 = vsel %vm378, %v376, 0.0
        %380 = vadd.xlane.f32.xlu0 %v379
        %v381 = vpop.xlane.xlu0 %380
        %v382 = vsel %vm378, %v377, 0.0
        %383 = vadd.xlane.f32.xlu0 %v382
        %v384 = vpop.xlane.xlu0 %383
        %v385 = vmul.f32 %v375, %v375
        %vm386 = vcmask 124928
        %v387 = vsel %vm386, %v385, 0.0
        %v388 = vrot.slane %v387, 4
        %v389 = vadd.f32 %v387, %v388
        %v390 = vrot.slane %v389, 2
        %v391 = vadd.f32 %v389, %v390
        %v392 = vrot.slane %v391, 1
        %v393 = vadd.f32 %v391, %v392
        %v395 = vsel %vm378, %v359, 0
        %v398 = vsel %vm378, %v360, 0
        %vm400 = vcmask 1042432
        %v402 = vsel %vm400, %v375, 0
        %404 = vmatprep.subr.mxu0 0.0
        %405 = vmatpush1.msra.mxu0 %v402
        %406 = vmatprep.subr.mxu0 0.0
        %407 = vmatpush1.msra.mxu0 0.0
        %408 = vmatprep.subr.mxu0 0.0
        %409 = vmatpush1.msra.mxu0 0.0
        %410 = vmatprep.subr.mxu0 0.0
        %411 = vmatpush1.msra.mxu0 0.0
        %412 = vmatprep.subr.mxu0 0.0
        %413 = vmatpush1.msra.mxu0 0.0
        %414 = vmatprep.subr.mxu0 0.0
        %415 = vmatpush1.msra.mxu0 0.0
        %416 = vmatprep.subr.mxu0 0.0
        %417 = vmatpush1.msra.mxu0 0.0
        %418 = vmatprep.subr.mxu0 0.0
        %419 = vmatpush1.msra.mxu0 0.0
        %420 = vmatprep.subr.mxu0 0.0
        %421 = vmatpush1.msra.mxu0 0.0
        %422 = vmatprep.subr.mxu0 0.0
        %423 = vmatpush1.msra.mxu0 0.0
        %424 = vmatprep.subr.mxu0 0.0
        %425 = vmatpush1.msra.mxu0 0.0
        %426 = vmatprep.subr.mxu0 0.0
        %427 = vmatpush1.msra.mxu0 0.0
        %428 = vmatprep.subr.mxu0 0.0
        %429 = vmatpush1.msra.mxu0 0.0
        %430 = vmatprep.subr.mxu0 0.0
        %431 = vmatpush1.msra.mxu0 0.0
        %432 = vmatprep.subr.mxu0 0.0
        %433 = vmatpush1.msra.mxu0 0.0
        %434 = vmatprep.subr.mxu0 0.0
        %435 = vmatpush1.msra.mxu0 0.0
        %436 = vmatprep.subr.mxu0 0.0
        %437 = vmatpush1.msra.mxu0 0.0
        %438 = vmatprep.subr.mxu0 0.0
        %439 = vmatpush1.msra.mxu0 0.0
        %440 = vmatprep.subr.mxu0 0.0
        %441 = vmatpush1.msra.mxu0 0.0
        %442 = vmatprep.subr.mxu0 0.0
        %443 = vmatpush1.msra.mxu0 0.0
        %444 = vmatprep.subr.mxu0 0.0
        %445 = vmatpush1.msra.mxu0 0.0
        %446 = vmatprep.subr.mxu0 0.0
        %447 = vmatpush1.msra.mxu0 0.0
        %448 = vmatprep.subr.mxu0 0.0
        %449 = vmatpush1.msra.mxu0 0.0
        %450 = vmatprep.subr.mxu0 0.0
        %451 = vmatpush1.msra.mxu0 0.0
        %452 = vmatprep.subr.mxu0 0.0
        %453 = vmatpush1.msra.mxu0 0.0
        %454 = vmatprep.subr.mxu0 0.0
        %455 = vmatpush1.msra.mxu0 0.0
        %456 = vmatprep.subr.mxu0 0.0
        %457 = vmatpush1.msra.mxu0 0.0
        %458 = vmatprep.subr.mxu0 0.0
        %459 = vmatpush1.msra.mxu0 0.0
        %460 = vmatprep.subr.mxu0 0.0
        %461 = vmatpush1.msra.mxu0 0.0
        %462 = vmatprep.subr.mxu0 0.0
        %463 = vmatpush1.msra.mxu0 0.0
        %464 = vmatprep.subr.mxu0 0.0
        %465 = vmatpush1.msra.mxu0 0.0
        %466 = vmatprep.subr.mxu0 0.0
        %467 = vmatpush1.msra.mxu0 0.0
        %468 = vmatprep.mubr.f32.mxu0 0.0
        %469 = vmatmul.mubr.f32.gmra.mrb[0].mxu0 %v395
        %v470 = vpop.f32.mrb[0].mxu0
        %v471 = vadd.f32 0.0, %v470
        %v472 = vpop.f32.mrb[0].mxu0
        %473 = vmatprep.mubr.f32.mxu0 0.0
        %474 = vmatmul.mubr.f32.gmra.mrb[0].mxu0 %v398
        %v475 = vpop.f32.mrb[0].mxu0
        %v476 = vadd.f32 0.0, %v475
        %v477 = vpop.f32.mrb[0].mxu0
        %478 = vdwg.mxu0
        %v479 = vmul.f32 %v471, 2.0
        %v480 = vmul.f32 %v476, 2.0
        %v481 = vsub.f32 %v479, %v381
        %v482 = vsub.f32 %v480, %v384
        %v483 = vsub.f32 %v481, %v393
        %v484 = vsub.f32 %v482, %v393
        %vm485 = vcmask 130048
        %486 = vst.msk [vmem:[%s301] sm:$0xff] %vm485, %v483
        %487 = vst.msk [vmem:[%s301 + $0x8] sm:$0xff] %vm485, %v484
        %v488 = vld [vmem:[%s330] sm:$0xf]
        %489 = vxpose.xlu0.b32.start [1/16] %v488, 128
        %490 = vxpose.xlu0.b32.cont [2/16] 0.0, 128
        %491 = vxpose.xlu0.b32.cont [3/16] 0.0, 128
        %492 = vxpose.xlu0.b32.cont [4/16] 0.0, 128
        %493 = vxpose.xlu0.b32.cont [5/16] 0.0, 128
        %494 = vxpose.xlu0.b32.cont [6/16] 0.0, 128
        %495 = vxpose.xlu0.b32.cont [7/16] 0.0, 128
        %496 = vxpose.xlu0.b32.cont [8/16] 0.0, 128
        %497 = vxpose.xlu0.b32.cont [9/16] 0.0, 128
        %498 = vxpose.xlu0.b32.cont [10/16] 0.0, 128
        %499 = vxpose.xlu0.b32.cont [11/16] 0.0, 128
        %500 = vxpose.xlu0.b32.cont [12/16] 0.0, 128
        %501 = vxpose.xlu0.b32.cont [13/16] 0.0, 128
        %502 = vxpose.xlu0.b32.cont [14/16] 0.0, 128
        %503 = vxpose.xlu0.b32.cont [15/16] 0.0, 128
        %504 = vxpose.xlu0.b32.end [16/16] 0.0, 128
        %v505 = vpop.trf.xlu0
        %v506 = vpop.trf.xlu0
        %v507 = vpop.trf.xlu0
        %v508 = vpop.trf.xlu0
        %v509 = vpop.trf.xlu0
        %v510 = vpop.trf.xlu0
        %v511 = vpop.trf.xlu0
        %v512 = vpop.trf.xlu0
        %v513 = vpop.trf.xlu0
        %v514 = vpop.trf.xlu0
        %v515 = vpop.trf.xlu0
        %v516 = vpop.trf.xlu0
        %v517 = vpop.trf.xlu0
        %v518 = vpop.trf.xlu0
        %v519 = vpop.trf.xlu0
        %v520 = vpop.trf.xlu0
        %v521 = vld [vmem:[%s3] sm:$0xf]
        %v522 = vld [vmem:[%s4] sm:$0x7]
        %v524 = vsel %vm400, %v522, 0
        %526 = vmatprep.subr.mxu0 0.0
        %527 = vmatpush1.msra.mxu0 %v524
        %528 = vmatprep.subr.mxu0 0.0
        %529 = vmatpush1.msra.mxu0 0.0
        %530 = vmatprep.subr.mxu0 0.0
        %531 = vmatpush1.msra.mxu0 0.0
        %532 = vmatprep.subr.mxu0 0.0
        %533 = vmatpush1.msra.mxu0 0.0
        %534 = vmatprep.subr.mxu0 0.0
        %535 = vmatpush1.msra.mxu0 0.0
        %536 = vmatprep.subr.mxu0 0.0
        %537 = vmatpush1.msra.mxu0 0.0
        %538 = vmatprep.subr.mxu0 0.0
        %539 = vmatpush1.msra.mxu0 0.0
        %540 = vmatprep.subr.mxu0 0.0
        %541 = vmatpush1.msra.mxu0 0.0
        %542 = vmatprep.subr.mxu0 0.0
        %543 = vmatpush1.msra.mxu0 0.0
        %544 = vmatprep.subr.mxu0 0.0
        %545 = vmatpush1.msra.mxu0 0.0
        %546 = vmatprep.subr.mxu0 0.0
        %547 = vmatpush1.msra.mxu0 0.0
        %548 = vmatprep.subr.mxu0 0.0
        %549 = vmatpush1.msra.mxu0 0.0
        %550 = vmatprep.subr.mxu0 0.0
        %551 = vmatpush1.msra.mxu0 0.0
        %552 = vmatprep.subr.mxu0 0.0
        %553 = vmatpush1.msra.mxu0 0.0
        %554 = vmatprep.subr.mxu0 0.0
        %555 = vmatpush1.msra.mxu0 0.0
        %556 = vmatprep.subr.mxu0 0.0
        %557 = vmatpush1.msra.mxu0 0.0
        %558 = vmatprep.subr.mxu0 0.0
        %559 = vmatpush1.msra.mxu0 0.0
        %560 = vmatprep.subr.mxu0 0.0
        %561 = vmatpush1.msra.mxu0 0.0
        %562 = vmatprep.subr.mxu0 0.0
        %563 = vmatpush1.msra.mxu0 0.0
        %564 = vmatprep.subr.mxu0 0.0
        %565 = vmatpush1.msra.mxu0 0.0
        %566 = vmatprep.subr.mxu0 0.0
        %567 = vmatpush1.msra.mxu0 0.0
        %568 = vmatprep.subr.mxu0 0.0
        %569 = vmatpush1.msra.mxu0 0.0
        %570 = vmatprep.subr.mxu0 0.0
        %571 = vmatpush1.msra.mxu0 0.0
        %572 = vmatprep.subr.mxu0 0.0
        %573 = vmatpush1.msra.mxu0 0.0
        %574 = vmatprep.subr.mxu0 0.0
        %575 = vmatpush1.msra.mxu0 0.0
        %576 = vmatprep.subr.mxu0 0.0
        %577 = vmatpush1.msra.mxu0 0.0
        %578 = vmatprep.subr.mxu0 0.0
        %579 = vmatpush1.msra.mxu0 0.0
        %580 = vmatprep.subr.mxu0 0.0
        %581 = vmatpush1.msra.mxu0 0.0
        %582 = vmatprep.subr.mxu0 0.0
        %583 = vmatpush1.msra.mxu0 0.0
        %584 = vmatprep.subr.mxu0 0.0
        %585 = vmatpush1.msra.mxu0 0.0
        %586 = vmatprep.subr.mxu0 0.0
        %587 = vmatpush1.msra.mxu0 0.0
        %588 = vmatprep.subr.mxu0 0.0
        %589 = vmatpush1.msra.mxu0 0.0
        %590 = vmatprep.mubr.f32.mxu0 0.0
        %591 = vmatmul.mubr.f32.gmra.mrb[0].mxu0 %v395
        %v592 = vpop.f32.mrb[0].mxu0
        %v593 = vadd.f32 0.0, %v592
        %v594 = vpop.f32.mrb[0].mxu0
        %595 = vmatprep.mubr.f32.mxu0 0.0
        %596 = vmatmul.mubr.f32.gmra.mrb[0].mxu0 %v398
        %v597 = vpop.f32.mrb[0].mxu0
        %v598 = vadd.f32 0.0, %v597
        %v599 = vpop.f32.mrb[0].mxu0
        %600 = vdwg.mxu0
        %vm601 = vcmask 31744
        %v603 = vsel %vm601, %v505, 0
        %v606 = vsel %vm601, %v506, 0
        %vm608 = vcmask 1043456
        %v610 = vsel %vm608, %v521, 0
        %612 = vmatprep.subr.mxu0 0.0
        %613 = vmatpush1.msra.mxu0 %v610
        %614 = vmatprep.subr.mxu0 0.0
        %615 = vmatpush1.msra.mxu0 0.0
        %616 = vmatprep.subr.mxu0 0.0
        %617 = vmatpush1.msra.mxu0 0.0
        %618 = vmatprep.subr.mxu0 0.0
        %619 = vmatpush1.msra.mxu0 0.0
        %620 = vmatprep.subr.mxu0 0.0
        %621 = vmatpush1.msra.mxu0 0.0
        %622 = vmatprep.subr.mxu0 0.0
        %623 = vmatpush1.msra.mxu0 0.0
        %624 = vmatprep.subr.mxu0 0.0
        %625 = vmatpush1.msra.mxu0 0.0
        %626 = vmatprep.subr.mxu0 0.0
        %627 = vmatpush1.msra.mxu0 0.0
        %628 = vmatprep.subr.mxu0 0.0
        %629 = vmatpush1.msra.mxu0 0.0
        %630 = vmatprep.subr.mxu0 0.0
        %631 = vmatpush1.msra.mxu0 0.0
        %632 = vmatprep.subr.mxu0 0.0
        %633 = vmatpush1.msra.mxu0 0.0
        %634 = vmatprep.subr.mxu0 0.0
        %635 = vmatpush1.msra.mxu0 0.0
        %636 = vmatprep.subr.mxu0 0.0
        %637 = vmatpush1.msra.mxu0 0.0
        %638 = vmatprep.subr.mxu0 0.0
        %639 = vmatpush1.msra.mxu0 0.0
        %640 = vmatprep.subr.mxu0 0.0
        %641 = vmatpush1.msra.mxu0 0.0
        %642 = vmatprep.subr.mxu0 0.0
        %643 = vmatpush1.msra.mxu0 0.0
        %644 = vmatprep.subr.mxu0 0.0
        %645 = vmatpush1.msra.mxu0 0.0
        %646 = vmatprep.subr.mxu0 0.0
        %647 = vmatpush1.msra.mxu0 0.0
        %648 = vmatprep.subr.mxu0 0.0
        %649 = vmatpush1.msra.mxu0 0.0
        %650 = vmatprep.subr.mxu0 0.0
        %651 = vmatpush1.msra.mxu0 0.0
        %652 = vmatprep.subr.mxu0 0.0
        %653 = vmatpush1.msra.mxu0 0.0
        %654 = vmatprep.subr.mxu0 0.0
        %655 = vmatpush1.msra.mxu0 0.0
        %656 = vmatprep.subr.mxu0 0.0
        %657 = vmatpush1.msra.mxu0 0.0
        %658 = vmatprep.subr.mxu0 0.0
        %659 = vmatpush1.msra.mxu0 0.0
        %660 = vmatprep.subr.mxu0 0.0
        %661 = vmatpush1.msra.mxu0 0.0
        %662 = vmatprep.subr.mxu0 0.0
        %663 = vmatpush1.msra.mxu0 0.0
        %664 = vmatprep.subr.mxu0 0.0
        %665 = vmatpush1.msra.mxu0 0.0
        %666 = vmatprep.subr.mxu0 0.0
        %667 = vmatpush1.msra.mxu0 0.0
        %668 = vmatprep.subr.mxu0 0.0
        %669 = vmatpush1.msra.mxu0 0.0
        %670 = vmatprep.subr.mxu0 0.0
        %671 = vmatpush1.msra.mxu0 0.0
        %672 = vmatprep.subr.mxu0 0.0
        %673 = vmatpush1.msra.mxu0 0.0
        %674 = vmatprep.subr.mxu0 0.0
        %675 = vmatpush1.msra.mxu0 0.0
        %676 = vmatprep.mubr.f32.mxu0 0.0
        %677 = vmatmul.mubr.f32.gmra.mrb[0].mxu0 %v603
        %v678 = vpop.f32.mrb[0].mxu0
        %v679 = vadd.f32 %v593, %v678
        %v680 = vpop.f32.mrb[0].mxu0
        %681 = vmatprep.mubr.f32.mxu0 0.0
        %682 = vmatmul.mubr.f32.gmra.mrb[0].mxu0 %v606
        %v683 = vpop.f32.mrb[0].mxu0
        %v684 = vadd.f32 %v598, %v683
        %v685 = vpop.f32.mrb[0].mxu0
        %686 = vdwg.mxu0
        %687 = vst.msk [vmem:[%s340] sm:$0xff] %vm601, %v679
        %688 = vst.msk [vmem:[%s340 + $0x8] sm:$0xff] %vm601, %v684
        %s689 = sand.u32 %s167, 1
        %s690 = scalar_lea.sflag [#allocation3], %s689
        %s691 = sand.u32 %s167, 1
        %s692 = smul.addr %s691, 16
        %s693 = scalar_lea.vmem [#allocation2], %s692
        %s694 = smul.u32 2, %s26
        %p695 = scmp.lt.s32.totalorder %s25, 1
        %s696 = scalar_select %p695, %s25, 1
        %p697 = scmp.lt.s32.totalorder %s694, 1
        %s698 = scalar_select %p697, %s694, 1
        %s699 = smul.addr %s696, 2
        %s700 = sadd.s32 %s698, %s699
        %s701 = smul.addr %s700, 8
        %s702 = scalar_lea.vmem %s6, %s701
        // Predicated region
        $region41: #{tpu_custom_call.1} parent=39 // pred_check
          %p703 = pneg %p177
        $region42: #{tpu_custom_call.1} parent=39 // pred_check_branch
          %705 = sbr.rel (%p703) target = $region44
        $region43: #{tpu_custom_call.1} parent=39 // pred_region
          %s706 = smul.u32 2, %s26
          %s708 = ssub.s32 256, 256
          %709 = vsyncadd %s690, %s708
          %s710 = smul.addr %s25, 2
          %s711 = sadd.s32 %s706, %s710
          %s712 = smul.addr %s711, 128
          %s713 = scalar_lea.hbm %s5, %s712
          %s714 = sshll.u32 %s693, 4
          %s715 = int_to_ptr.vmem [resolvable:$true] %s714
          %720 = dma.vmem_to_hbm [thread:$0]  %s715, 256, %s713, %s690, 128, 128, 8
        $region44: #{tpu_custom_call.1} parent=39 // pred_fallthru
          _
        // Predicated region
        $region45: #{tpu_custom_call.1} parent=39 // pred_check
          %p721 = pneg %p205
        $region46: #{tpu_custom_call.1} parent=39 // pred_check_branch
          %723 = sbr.rel (%p721) target = $region48
        $region47: #{tpu_custom_call.1} parent=39 // pred_region
          %s724 = smul.u32 2, %s26
        $region48: #{tpu_custom_call.1} parent=39 // pred_fallthru
          _
      $region40: #{tpu_custom_call.1} parent=5 // pred_fallthru
        _
      %p725 = scmp.le.s32.totalorder 2, %s16
      // Predicated region
      $region49: #{tpu_custom_call.1} parent=5 // pred_check
        %p726 = pneg %p725
      $region50: #{tpu_custom_call.1} parent=5 // pred_check_branch
        %728 = sbr.rel (%p726) target = $region52
      $region51: #{tpu_custom_call.1} parent=5 // pred_region
        %s729 = ssub.s32 %s16, 2
        // Predicated region
        $region53: #{tpu_custom_call.1} parent=51 // pred_check
          %p730 = pneg %p183
        $region54: #{tpu_custom_call.1} parent=51 // pred_check_branch
          %732 = sbr.rel (%p730) target = $region56
        $region55: #{tpu_custom_call.1} parent=51 // pred_region
          %s733 = sand.u32 %s168, 1
          %s734 = scalar_lea.sflag [#allocation3], %s733
          %s735 = sand.u32 %s168, 1
          %s736 = smul.addr %s735, 16
          %s737 = scalar_lea.vmem [#allocation2], %s736
          %738 = dma.done %s734, 256
        $region56: #{tpu_custom_call.1} parent=51 // pred_fallthru
          _
        // Predicated region
        $region57: #{tpu_custom_call.1} parent=51 // pred_check
          %p739 = pneg %p211
        $region58: #{tpu_custom_call.1} parent=51 // pred_check_branch
          %741 = sbr.rel (%p739) target = $region60
        $region59: #{tpu_custom_call.1} parent=51 // pred_region
          %s742 = smul.u32 2, %s28
          %p743 = scmp.lt.s32.totalorder %s27, 1
          %s744 = scalar_select %p743, %s27, 1
          %p745 = scmp.lt.s32.totalorder %s742, 1
          %s746 = scalar_select %p745, %s742, 1
          %s747 = smul.addr %s744, 2
          %s748 = sadd.s32 %s746, %s747
          %s749 = smul.addr %s748, 8
          %s750 = scalar_lea.vmem %s6, %s749
        $region60: #{tpu_custom_call.1} parent=51 // pred_fallthru
          _
      $region52: #{tpu_custom_call.1} parent=5 // pred_fallthru
        _
    $region6: #{tpu_custom_call.1} parent=1 // loop_footer
      %s20 = sadd.s32 1, %s16
    $region7: #{tpu_custom_call.1} parent=1 // loop_footer_branch
      %15 = sbr.rel target = $region3
    $region8: #{tpu_custom_call.1} parent=1 // loop_exit
      _
    %751 = vsyncpa [#allocation3], 1
    %s752 = scalar_lea.sflag [#allocation3], 1
    %753 = vsyncpa %s752, 1

</llo_original>
